<compile_context>
chip_gen: v7x
topology: tpu7x:2x2x1
jax: 0.10.0
libtpu: 0.0.40
codegen_flags: <defaults>
</compile_context>

<pallas_src>
import jax
import jax.numpy as jnp
from jax import lax
from jax.experimental import pallas as pl
from jax.experimental.pallas import tpu as pltpu

_NEG_BIG = -1e30   # finite "minus infinity": masked keys never produce NaN
_LANE = 128


def _bf16_eup_available():
    """bf16 transcendentals (EUP) exist on v6e/v7x; not on <= v5."""
    try:
        kind = jax.devices()[0].device_kind.lower()
    except Exception:
        return False
    return not any(tag in kind for tag in ("v2", "v3", "v4", "v5"))


# --------------------------------------------------------------------------
# Prologue: fused Q/K/V projection (1x1 convs == channel matmuls)
# --------------------------------------------------------------------------
def _make_proj_kernel(c8, c8p, n_real, tp):
    def kernel(x_ref, w_ref, b_ref, q_ref, k_ref, v_ref):
        # One stacked matmul, bf16 operands / f32 accumulation.
        y = jnp.dot(w_ref[...], x_ref[0],
                    preferred_element_type=jnp.float32) + b_ref[...]
        q = y[:c8p]                       # (C8p, TP) — slice at multiple of 8
        k = y[c8p:2 * c8p]                # (C8p, TP)
        v = y[2 * c8p:]                   # (C,   TP)

        # Mask channel (row c8) of K: 0 for real columns, -BIG for padded
        # lane columns.  Q's mask channel is 1 via its bias, so the score
        # matmul adds 0 (valid) or -BIG (padded) — no per-step masking later.
        ti = pl.program_id(1)
        cols = ti * tp + lax.broadcasted_iota(jnp.int32, (1, tp), 1)
        mask_row = jnp.where(cols < n_real, 0.0, _NEG_BIG)            # (1, TP)
        rows = lax.broadcasted_iota(jnp.int32, (c8p, 1), 0)
        k = jnp.where(rows == c8, mask_row, k)

        q_ref[0] = q.astype(q_ref.dtype)
        k_ref[0] = k.astype(k_ref.dtype)
        v_ref[0] = v.astype(v_ref.dtype)

    return kernel


# --------------------------------------------------------------------------
# Flash attention + gamma residual
# --------------------------------------------------------------------------
def _make_attn_kernel(use_bf16_exp):
    def kernel(xres_ref, q_ref, k_ref, v_ref, gamma_ref, o_ref,
               m_sc, l_sc, acc_sc):
        ki = pl.program_id(2)

        @pl.when(ki == 0)
        def _init():
            m_sc[...] = jnp.full_like(m_sc, _NEG_BIG)
            l_sc[...] = jnp.zeros_like(l_sc)
            acc_sc[...] = jnp.zeros_like(acc_sc)

        # scores[j, i] = <k_j, q_i>: keys on sublanes, queries on lanes, so the
        # softmax stats are (1, TQ).  bf16 operands, f32 accumulation; the
        # padding mask rides along in the extra mask channel of q/k.
        scores = lax.dot_general(k_ref[0], q_ref[0],
                                 (((0,), (0,)), ((), ())),
                                 preferred_element_type=jnp.float32)  # (TK, TQ)

        # Online softmax over the key (sublane) axis; stats in f32.
        m_prev = m_sc[...]                                            # (1, TQ)
        m_new = jnp.maximum(m_prev, jnp.max(scores, axis=0, keepdims=True))
        alpha = jnp.exp(m_prev - m_new)                               # (1, TQ)
        if use_bf16_exp:
            p = jnp.exp((scores - m_new).astype(jnp.bfloat16))        # bf16 EUP
            psum = jnp.sum(p, axis=0, keepdims=True, dtype=jnp.float32)
            pv = p
        else:
            p = jnp.exp(scores - m_new)                               # f32 EUP
            psum = jnp.sum(p, axis=0, keepdims=True)
            pv = p.astype(jnp.bfloat16)
        l_sc[...] = alpha * l_sc[...] + psum
        acc_sc[...] = alpha * acc_sc[...] + jnp.dot(
            v_ref[0], pv, preferred_element_type=jnp.float32)         # (C, TQ)
        m_sc[...] = m_new

        @pl.when(ki == pl.num_programs(2) - 1)
        def _finalize():
            gamma = gamma_ref[0]                                      # SMEM scalar
            inv_l = pl.reciprocal(l_sc[...], approx=True)             # (1, TQ) EUP
            out = gamma * (acc_sc[...] * inv_l) + xres_ref[0]         # f32 residual
            o_ref[0] = out.astype(o_ref.dtype)

    return kernel


# --------------------------------------------------------------------------
# Wrapper
# --------------------------------------------------------------------------
def self_attention_pallas(x_nchw, params, *, tq=None, tk=None, bf16_exp=None):
    B, C, W, H = x_nchw.shape
    N = W * H
    c8 = params["wq"].shape[0]
    # +1 row for the padding-mask channel, then sublane-align to 8.
    c8p = (c8 + 1 + 7) // 8 * 8

    v6plus = _bf16_eup_available()
    if bf16_exp is None:
        bf16_exp = v6plus

    # Pad flattened spatial dim to a lane-dense multiple of 128.
    Np = -(-N // _LANE) * _LANE
    if tq is None:
        # 256-wide output lanes feed the v6e/v7x 256-wide MXU; 128 on v5e.
        tq = 256 if (v6plus and Np % 256 == 0) else _LANE
    if tk is None:
        tk = next(t for t in (1024, 512, 256, _LANE) if Np % t == 0)
    assert tq % _LANE == 0 and tk % _LANE == 0
    assert Np % tq == 0 and Np % tk == 0
    tp = next(t for t in (512, 256, _LANE) if Np % t == 0)

    x = x_nchw.reshape(B, C, N).astype(jnp.float32)
    if Np != N:
        x = jnp.pad(x, ((0, 0), (0, 0), (0, Np - N)))
    x_bf16 = x.astype(jnp.bfloat16)

    # Stack [Wq; Wk; Wv] with q/k padded to c8p rows.  Row c8 is the mask
    # channel: Wq row = 0, bq = 1 (q mask channel == 1); Wk row = 0, bk = 0
    # (k mask channel overwritten per-column inside the projection kernel).
    def pad_qk(w, b, mask_bias):
        wp = jnp.zeros((c8p, C), jnp.float32).at[:c8].set(w)
        bp = jnp.zeros((c8p, 1), jnp.float32).at[:c8].set(b)
        bp = bp.at[c8, 0].set(mask_bias)
        return wp, bp

    wq_p, bq_p = pad_qk(params["wq"], params["bq"], 1.0)
    wk_p, bk_p = pad_qk(params["wk"], params["bk"], 0.0)
    w_all = jnp.concatenate([wq_p, wk_p, params["wv"]], axis=0).astype(jnp.bfloat16)
    b_all = jnp.concatenate([bq_p, bk_p, params["bv"]], axis=0).astype(jnp.float32)
    gamma = params["gamma"].reshape(1).astype(jnp.float32)

    # ---- Prologue: project Q/K/V once per batch --------------------------
    const2d = lambda shape: pl.BlockSpec(shape, lambda b, t: (0, 0))
    q, k, v = pl.pallas_call(
        _make_proj_kernel(c8, c8p, N, tp),
        out_shape=(
            jax.ShapeDtypeStruct((B, c8p, Np), jnp.bfloat16),
            jax.ShapeDtypeStruct((B, c8p, Np), jnp.bfloat16),
            jax.ShapeDtypeStruct((B, C, Np), jnp.bfloat16),
        ),
        grid_spec=pltpu.PrefetchScalarGridSpec(
            num_scalar_prefetch=0,
            grid=(B, Np // tp),
            in_specs=[
                pl.BlockSpec((1, C, tp), lambda b, t: (b, 0, t)),   # x (bf16)
                const2d((2 * c8p + C, C)),                          # [Wq;Wk;Wv]
                const2d((2 * c8p + C, 1)),                          # [bq;bk;bv]
            ],
            out_specs=[
                pl.BlockSpec((1, c8p, tp), lambda b, t: (b, 0, t)),
                pl.BlockSpec((1, c8p, tp), lambda b, t: (b, 0, t)),
                pl.BlockSpec((1, C, tp), lambda b, t: (b, 0, t)),
            ],
        ),
        compiler_params=pltpu.CompilerParams(
            dimension_semantics=("parallel", "parallel")),
    )(x_bf16, w_all, b_all)

    # ---- Flash attention + gamma residual ---------------------------------
    out = pl.pallas_call(
        _make_attn_kernel(bf16_exp),
        out_shape=jax.ShapeDtypeStruct((B, C, Np), jnp.float32),
        grid_spec=pltpu.PrefetchScalarGridSpec(
            num_scalar_prefetch=0,
            grid=(B, Np // tq, Np // tk),
            in_specs=[
                pl.BlockSpec((1, C, tq), lambda b, qi, ki: (b, 0, qi)),    # x (f32 residual)
                pl.BlockSpec((1, c8p, tq), lambda b, qi, ki: (b, 0, qi)),  # Q tile
                pl.BlockSpec((1, c8p, tk), lambda b, qi, ki: (b, 0, ki)),  # K tile
                pl.BlockSpec((1, C, tk), lambda b, qi, ki: (b, 0, ki)),    # V tile
                pl.BlockSpec(memory_space=pltpu.MemorySpace.SMEM),         # gamma scalar
            ],
            out_specs=pl.BlockSpec((1, C, tq), lambda b, qi, ki: (b, 0, qi)),
            scratch_shapes=[
                pltpu.VMEM((1, tq), jnp.float32),   # running max
                pltpu.VMEM((1, tq), jnp.float32),   # running sum
                pltpu.VMEM((C, tq), jnp.float32),   # output accumulator
            ],
        ),
        compiler_params=pltpu.CompilerParams(
            dimension_semantics=("parallel", "parallel", "arbitrary")),
    )(x, q, k, v, gamma)

    return out[:, :, :N].reshape(B, C, W, H)


# --------------------------------------------------------------------------
# Reference (matches the PyTorch module semantics) + test harness
# --------------------------------------------------------------------------
def reference_self_attention(x_nchw, params):
    B, C, W, H = x_nchw.shape
    N = W * H
    x = x_nchw.reshape(B, C, N).astype(jnp.float32)
    q = jnp.einsum("oc,bcn->bon", params["wq"], x) + params["bq"][None]
    k = jnp.einsum("oc,bcn->bon", params["wk"], x) + params["bk"][None]
    v = jnp.einsum("oc,bcn->bon", params["wv"], x) + params["bv"][None]
    energy = jnp.einsum("bci,bcj->bij", q, k)      # i = query, j = key
    attn = jax.nn.softmax(energy, axis=-1)
    out = jnp.einsum("bcj,bij->bci", v, attn)
    out = params["gamma"][0, 0] * out + x
    return out.reshape(B, C, W, H)


def init_params(key, in_dim):
    c8 = in_dim // 8
    ks = jax.random.split(key, 6)
    s = 0.1
    return {
        "wq": s * jax.random.normal(ks[0], (c8, in_dim), jnp.float32),
        "bq": s * jax.random.normal(ks[1], (c8, 1), jnp.float32),
        "wk": s * jax.random.normal(ks[2], (c8, in_dim), jnp.float32),
        "bk": s * jax.random.normal(ks[3], (c8, 1), jnp.float32),
        "wv": s * jax.random.normal(ks[4], (in_dim, in_dim), jnp.float32),
        "bv": s * jax.random.normal(ks[5], (in_dim, 1), jnp.float32),
        # nn.Parameter(torch.zeros(1)) initializes gamma to 0; use a nonzero
        # value so the attention path actually contributes to the check.
        "gamma": jnp.full((1, 1), 0.5, jnp.float32),
    }


if __name__ == "__main__":
    # B=2, C=16 (so C8=2), spatial 16x12 -> N=192, padded to 256 lanes.
    B, C, W, H = 2, 16, 16, 12
    key = jax.random.PRNGKey(0)
    kx, kp = jax.random.split(key)
    x = jax.random.normal(kx, (B, C, W, H), jnp.float32)
    params = init_params(kp, C)

    # tq=tk=128 -> attention grid (2, 2, 2): exercises multi-tile online
    # softmax, the baked-in padded-key mask, and the parallel q-tile axis.
    out = self_attention_pallas(x, params, tq=128, tk=128)
    out = jax.block_until_ready(out)

    ref = reference_self_attention(x, params)
    assert out.shape == (B, C, W, H)
    # bf16 MXU operands + approx reciprocal => looser tolerance than pure f32.
    assert jnp.allclose(out, ref, atol=5e-2, rtol=5e-2), "mismatch vs reference"

    print("KERNEL_OK")
</pallas_src>

<mosaic_0001>
module attributes {stable_mosaic.version = 11 : i64} {
  func.func @kernel(%arg0: i32, %arg1: i32, %arg2: memref<1x16x256xbf16, #tpu.memory_space<vmem>>, %arg3: memref<32x16xbf16, #tpu.memory_space<vmem>>, %arg4: memref<32x1xf32, #tpu.memory_space<vmem>>, %arg5: memref<1x8x256xbf16, #tpu.memory_space<vmem>>, %arg6: memref<1x8x256xbf16, #tpu.memory_space<vmem>>, %arg7: memref<1x16x256xbf16, #tpu.memory_space<vmem>>) attributes {dimension_semantics = [#tpu.dimension_semantics<parallel>, #tpu.dimension_semantics<parallel>], iteration_bounds = array<i64: 2, 1>, scalar_prefetch = 0 : i64, scratch_operands = 0 : i64, tpu.core_type = #tpu.core_type<tc>, window_params = [{transform_indices = @transform_0, window_bounds = array<i64: 1, 16, 256>}, {pipeline_mode = #tpu.pipeline_mode<synchronous>, transform_indices = @transform_1, window_bounds = array<i64: 32, 16>}, {pipeline_mode = #tpu.pipeline_mode<synchronous>, transform_indices = @transform_2, window_bounds = array<i64: 32, 1>}, {transform_indices = @transform_3, window_bounds = array<i64: 1, 8, 256>}, {transform_indices = @transform_4, window_bounds = array<i64: 1, 8, 256>}, {transform_indices = @transform_5, window_bounds = array<i64: 1, 16, 256>}]} {
    %c0 = arith.constant 0 : index
    %c0_0 = arith.constant 0 : index
    %0 = vector.load %arg3[%c0, %c0_0] : memref<32x16xbf16, #tpu.memory_space<vmem>>, vector<32x16xbf16>
    %c0_1 = arith.constant 0 : index
    %c0_2 = arith.constant 0 : index
    %c0_3 = arith.constant 0 : index
    %1 = vector.load %arg2[%c0_1, %c0_2, %c0_3] : memref<1x16x256xbf16, #tpu.memory_space<vmem>>, vector<1x16x256xbf16>
    %2 = vector.shape_cast %1 : vector<1x16x256xbf16> to vector<16x256xbf16>
    %cst = arith.constant dense<0.000000e+00> : vector<32x256xf32>
    %3 = tpu.matmul %0, %2, %cst {dimension_numbers = #tpu.dot_dimension_numbers<[1], [0], [0], [1], [0, 0, 1, 1], [], []>} : vector<32x16xbf16>, vector<16x256xbf16>, vector<32x256xf32> -> vector<32x256xf32>
    %c0_4 = arith.constant 0 : index
    %c0_5 = arith.constant 0 : index
    %4 = vector.load %arg4[%c0_4, %c0_5] : memref<32x1xf32, #tpu.memory_space<vmem>>, vector<32x1xf32>
    %5 = vector.broadcast %4 : vector<32x1xf32> to vector<32x256xf32>
    %6 = arith.addf %3, %5 : vector<32x256xf32>
    %7 = vector.extract_strided_slice %6 {offsets = [0, 0], sizes = [8, 256], strides = [1, 1]} : vector<32x256xf32> to vector<8x256xf32>
    %8 = vector.extract_strided_slice %6 {offsets = [8, 0], sizes = [8, 256], strides = [1, 1]} : vector<32x256xf32> to vector<8x256xf32>
    %9 = vector.extract_strided_slice %6 {offsets = [16, 0], sizes = [16, 256], strides = [1, 1]} : vector<32x256xf32> to vector<16x256xf32>
    %c256_i32 = arith.constant 256 : i32
    %10 = arith.muli %arg1, %c256_i32 : i32
    %11 = tpu.iota {dimensions = array<i32: 1>} : vector<1x256xi32>
    %12 = vector.broadcast %10 : i32 to vector<1x256xi32>
    %13 = arith.addi %12, %11 : vector<1x256xi32>
    %c192_i32 = arith.constant 192 : i32
    %14 = vector.broadcast %c192_i32 : i32 to vector<1x256xi32>
    %15 = arith.cmpi slt, %13, %14 : vector<1x256xi32>
    %cst_6 = arith.constant 0.000000e+00 : f32
    %cst_7 = arith.constant -1.000000e+30 : f32
    %16 = vector.broadcast %cst_6 : f32 to vector<1x256xf32>
    %17 = vector.broadcast %cst_7 : f32 to vector<1x256xf32>
    %18 = arith.select %15, %16, %17 : vector<1x256xi1>, vector<1x256xf32>
    %19 = tpu.iota {dimensions = array<i32: 0>} : vector<8x1xi32>
    %c2_i32 = arith.constant 2 : i32
    %20 = vector.broadcast %c2_i32 : i32 to vector<8x1xi32>
    %21 = arith.cmpi eq, %19, %20 : vector<8x1xi32>
    %22 = vector.shape_cast %21 : vector<8x1xi1> to vector<8x1xi1>
    %23 = vector.broadcast %22 : vector<8x1xi1> to vector<8x256xi1>
    %24 = vector.shape_cast %18 : vector<1x256xf32> to vector<1x256xf32>
    %25 = vector.broadcast %24 : vector<1x256xf32> to vector<8x256xf32>
    %26 = arith.select %23, %25, %8 : vector<8x256xi1>, vector<8x256xf32>
    %27 = arith.truncf %7 : vector<8x256xf32> to vector<8x256xbf16>
    %c0_8 = arith.constant 0 : index
    %c0_9 = arith.constant 0 : index
    %c0_10 = arith.constant 0 : index
    %28 = vector.load %arg5[%c0_8, %c0_9, %c0_10] : memref<1x8x256xbf16, #tpu.memory_space<vmem>>, vector<1x8x256xbf16>
    %29 = vector.shape_cast %28 : vector<1x8x256xbf16> to vector<8x256xbf16>
    %30 = vector.shape_cast %27 : vector<8x256xbf16> to vector<1x8x256xbf16>
    tpu.vector_store %arg5[%c0_8, %c0_9, %c0_10], %30 {strides = array<i32>} : memref<1x8x256xbf16, #tpu.memory_space<vmem>>, vector<1x8x256xbf16>,
    %31 = arith.truncf %26 : vector<8x256xf32> to vector<8x256xbf16>
    %c0_11 = arith.constant 0 : index
    %c0_12 = arith.constant 0 : index
    %c0_13 = arith.constant 0 : index
    %32 = vector.load %arg6[%c0_11, %c0_12, %c0_13] : memref<1x8x256xbf16, #tpu.memory_space<vmem>>, vector<1x8x256xbf16>
    %33 = vector.shape_cast %32 : vector<1x8x256xbf16> to vector<8x256xbf16>
    %34 = vector.shape_cast %31 : vector<8x256xbf16> to vector<1x8x256xbf16>
    tpu.vector_store %arg6[%c0_11, %c0_12, %c0_13], %34 {strides = array<i32>} : memref<1x8x256xbf16, #tpu.memory_space<vmem>>, vector<1x8x256xbf16>,
    %35 = arith.truncf %9 : vector<16x256xf32> to vector<16x256xbf16>
    %c0_14 = arith.constant 0 : index
    %c0_15 = arith.constant 0 : index
    %c0_16 = arith.constant 0 : index
    %36 = vector.load %arg7[%c0_14, %c0_15, %c0_16] : memref<1x16x256xbf16, #tpu.memory_space<vmem>>, vector<1x16x256xbf16>
    %37 = vector.shape_cast %36 : vector<1x16x256xbf16> to vector<16x256xbf16>
    %38 = vector.shape_cast %35 : vector<16x256xbf16> to vector<1x16x256xbf16>
    tpu.vector_store %arg7[%c0_14, %c0_15, %c0_16], %38 {strides = array<i32>} : memref<1x16x256xbf16, #tpu.memory_space<vmem>>, vector<1x16x256xbf16>,
    return
  }
  func.func @transform_0(%arg0: i32, %arg1: i32) -> (i32, i32, i32) {
    %c0_i32 = arith.constant 0 : i32
    %c0_i32_0 = arith.constant 0 : i32
    return %arg0, %c0_i32, %arg1 : i32, i32, i32
  }
  func.func @transform_1(%arg0: i32, %arg1: i32) -> (i32, i32) {
    %c0_i32 = arith.constant 0 : i32
    %c0_i32_0 = arith.constant 0 : i32
    %c0_i32_1 = arith.constant 0 : i32
    return %c0_i32, %c0_i32_0 : i32, i32
  }
  func.func @transform_2(%arg0: i32, %arg1: i32) -> (i32, i32) {
    %c0_i32 = arith.constant 0 : i32
    %c0_i32_0 = arith.constant 0 : i32
    %c0_i32_1 = arith.constant 0 : i32
    return %c0_i32, %c0_i32_0 : i32, i32
  }
  func.func @transform_3(%arg0: i32, %arg1: i32) -> (i32, i32, i32) {
    %c0_i32 = arith.constant 0 : i32
    %c0_i32_0 = arith.constant 0 : i32
    return %arg0, %c0_i32, %arg1 : i32, i32, i32
  }
  func.func @transform_4(%arg0: i32, %arg1: i32) -> (i32, i32, i32) {
    %c0_i32 = arith.constant 0 : i32
    %c0_i32_0 = arith.constant 0 : i32
    return %arg0, %c0_i32, %arg1 : i32, i32, i32
  }
  func.func @transform_5(%arg0: i32, %arg1: i32) -> (i32, i32, i32) {
    %c0_i32 = arith.constant 0 : i32
    %c0_i32_0 = arith.constant 0 : i32
    return %arg0, %c0_i32, %arg1 : i32, i32, i32
  }
}

</mosaic_0001>

<llo_original>
// kernel: tpu_custom_call.1
$region0: #{tpu_custom_call.1}
  #allocation0 [shape = 'u32[]', space=smem, size = 0x4, offset = 0x4, fixed_abs, tag = 'smem constant byte address 0x4 - core index']
  #allocation1 [shape = 'u32[144,128]{1,0:T(1,128)}', space=vmem, size = 0x12000, scoped, tag = 'internal scratch']
  %s0 = inlined_call_operand.vmem [shape: bf16[2,16,256], index: 0, kind: input, shape index: {}]
  %s1 = inlined_call_operand.vmem [shape: bf16[32,16], index: 1, kind: input, shape index: {}]
  %s2 = inlined_call_operand.vmem [shape: f32[32,1], index: 2, kind: input, shape index: {}]
  %s3 = inlined_call_operand.hbm [shape: bf16[2,8,256], index: 3, kind: output, shape index: {0}]
  %s4 = inlined_call_operand.hbm [shape: bf16[2,8,256], index: 4, kind: output, shape index: {1}]
  %s5 = inlined_call_operand.hbm [shape: bf16[2,16,256], index: 5, kind: output, shape index: {2}]
  %6 = xla_tuple %s3, %s4, %s5
  %s7 = sld [smem:[#allocation0]]
  $region61: #{tpu_custom_call.1} parent=0
    _
  %s9 = ssub.s32 1, %s7
  %s10 = scalar_select 0, %s9, %s7
  $region1: #{tpu_custom_call.1} parent=0
    #allocation2 [shape = 'u8[8192]{0}', space=vmem, size = 0x2000, scoped, tag = 'output window, operand 0']
    #allocation3 [shape = 's32[2]{0}', space=sflag, size = 0x8, scoped, tag = 'scoped memory for tpu_custom_call.1']
    #allocation4 [shape = 'u8[8192]{0}', space=vmem, size = 0x2000, scoped, tag = 'output window, operand 1']
    #allocation5 [shape = 's32[2]{0}', space=sflag, size = 0x8, scoped, tag = 'scoped memory for tpu_custom_call.1']
    #allocation6 [shape = 'u8[16384]{0}', space=vmem, size = 0x4000, scoped, tag = 'output window, operand 2']
    %11 = vsyncpa [#allocation3], 0
    %s12 = scalar_lea.sflag [#allocation3], 1
    %13 = vsyncpa %s12, 0
    %14 = vsyncpa [#allocation5], 0
    %s15 = scalar_lea.sflag [#allocation5], 1
    %16 = vsyncpa %s15, 0
    loop: start=0, step=1, limit=4
    $region2: #{tpu_custom_call.1} parent=1 // loop_pre_header
      _
    $region3: #{tpu_custom_call.1} parent=1 // loop_header
      %s18 = sphi 0, %s22
      %p19 = scmp.ge.s32.totalorder %s18, 4
      %s25 = sphi 0, %s37
      %s26 = sphi 0, %s33
      %s27 = sphi 0, %s25
      %s28 = sphi 0, %s26
      %s29 = sphi 0, %s27
      %s30 = sphi 0, %s28
      %s42 = sphi 0, %s44
      %s45 = sphi 0, %s42
      %s46 = sphi 0, %s45
      %s62 = sphi 0, %s46
      %s66 = sphi 0, %s66
      %s68 = sphi 0, %s66
      %s69 = sphi 0, %s68
      %s83 = sphi 0, %s69
      %s87 = sphi 0, %s87
      %s89 = sphi 0, %s87
      %s90 = sphi 0, %s89
      %s104 = sphi 0, %s90
      %s112 = sphi 0, %s114
      %s115 = sphi 0, %s112
      %s116 = sphi 0, %s115
      %s132 = sphi 0, %s116
      %s140 = sphi 0, %s142
      %s143 = sphi 0, %s140
      %s144 = sphi 0, %s143
      %s160 = sphi 0, %s144
      %s168 = sphi 0, %s170
      %s171 = sphi 0, %s168
      %s172 = sphi 0, %s171
      %s188 = sphi 0, %s172
    $region4: #{tpu_custom_call.1} parent=1 // loop_header_branch
      %21 = sbr.rel (%p19) target = $region8
    $region5: #{tpu_custom_call.1} parent=1 // loop_body
      %s23 = ssub.s32 %s18, 1
      %s24 = ssub.s32 %s18, 2
      %s31 = sadd.s32 1, %s26
      %p32 = scmp.ge.s32.totalorder %s31, 1
      %s33 = scalar_select %p32, 0, %s31
      %s34 = sadd.s32 1, %s25
      %s35 = scalar_select %p32, %s34, %s25
      %p36 = scmp.ge.s32.totalorder %s35, 2
      %s37 = scalar_select %p36, 0, %s35
      %s38 = ssub.s32 %s25, %s37
      %s39 = ssub.s32 %s26, %s33
      %s40 = sor.u32 %s38, %s39
      %p41 = scmp.eq.s32.totalorder %s40, 0
      %s43 = sadd.s32 %s42, 1
      %s44 = scalar_select %p41, %s42, %s43
      %p47 = pneg %p41
      %p48 = scmp.eq.s32.totalorder %s18, 1
      %p49 = por %p47, %p48
      %p50 = scmp.ne.s32.totalorder %s42, %s45
      %p51 = scmp.eq.s32.totalorder %s18, 0
      %p52 = por %p50, %p51
      %p53 = scmp.ne.s32.totalorder %s42, %s45
      %p54 = scmp.eq.s32.totalorder %s23, 1
      %p55 = por %p53, %p54
      %p56 = scmp.ne.s32.totalorder %s45, %s46
      %p57 = scmp.eq.s32.totalorder %s23, 0
      %p58 = por %p56, %p57
      %p59 = scmp.ne.s32.totalorder %s45, %s46
      %p60 = scmp.eq.s32.totalorder %s24, 1
      %p61 = por %p59, %p60
      %p63 = scmp.ne.s32.totalorder %s46, %s62
      %p64 = scmp.eq.s32.totalorder %s24, 0
      %p65 = por %p63, %p64
      %s67 = sadd.s32 %s66, 1
      %p70 = scmp.eq.s32.totalorder %s18, 1
      %p71 = scmp.ne.s32.totalorder %s66, %s68
      %p72 = scmp.eq.s32.totalorder %s18, 0
      %p73 = por %p71, %p72
      %p74 = scmp.ne.s32.totalorder %s66, %s68
      %p75 = scmp.eq.s32.totalorder %s23, 1
      %p76 = por %p74, %p75
      %p77 = scmp.ne.s32.totalorder %s68, %s69
      %p78 = scmp.eq.s32.totalorder %s23, 0
      %p79 = por %p77, %p78
      %p80 = scmp.ne.s32.totalorder %s68, %s69
      %p81 = scmp.eq.s32.totalorder %s24, 1
      %p82 = por %p80, %p81
      %p84 = scmp.ne.s32.totalorder %s69, %s83
      %p85 = scmp.eq.s32.totalorder %s24, 0
      %p86 = por %p84, %p85
      %s88 = sadd.s32 %s87, 1
      %p91 = scmp.eq.s32.totalorder %s18, 1
      %p92 = scmp.ne.s32.totalorder %s87, %s89
      %p93 = scmp.eq.s32.totalorder %s18, 0
      %p94 = por %p92, %p93
      %p95 = scmp.ne.s32.totalorder %s87, %s89
      %p96 = scmp.eq.s32.totalorder %s23, 1
      %p97 = por %p95, %p96
      %p98 = scmp.ne.s32.totalorder %s89, %s90
      %p99 = scmp.eq.s32.totalorder %s23, 0
      %p100 = por %p98, %p99
      %p101 = scmp.ne.s32.totalorder %s89, %s90
      %p102 = scmp.eq.s32.totalorder %s24, 1
      %p103 = por %p101, %p102
      %p105 = scmp.ne.s32.totalorder %s90, %s104
      %p106 = scmp.eq.s32.totalorder %s24, 0
      %p107 = por %p105, %p106
      %s108 = ssub.s32 %s25, %s37
      %s109 = ssub.s32 %s26, %s33
      %s110 = sor.u32 %s108, %s109
      %p111 = scmp.eq.s32.totalorder %s110, 0
      %s113 = sadd.s32 %s112, 1
      %s114 = scalar_select %p111, %s112, %s113
      %p117 = pneg %p111
      %p118 = scmp.eq.s32.totalorder %s18, 1
      %p119 = por %p117, %p118
      %p120 = scmp.ne.s32.totalorder %s112, %s115
      %p121 = scmp.eq.s32.totalorder %s18, 0
      %p122 = por %p120, %p121
      %p123 = scmp.ne.s32.totalorder %s112, %s115
      %p124 = scmp.eq.s32.totalorder %s23, 1
      %p125 = por %p123, %p124
      %p126 = scmp.ne.s32.totalorder %s115, %s116
      %p127 = scmp.eq.s32.totalorder %s23, 0
      %p128 = por %p126, %p127
      %p129 = scmp.ne.s32.totalorder %s115, %s116
      %p130 = scmp.eq.s32.totalorder %s24, 1
      %p131 = por %p129, %p130
      %p133 = scmp.ne.s32.totalorder %s116, %s132
      %p134 = scmp.eq.s32.totalorder %s24, 0
      %p135 = por %p133, %p134
      %s136 = ssub.s32 %s25, %s37
      %s137 = ssub.s32 %s26, %s33
      %s138 = sor.u32 %s136, %s137
      %p139 = scmp.eq.s32.totalorder %s138, 0
      %s141 = sadd.s32 %s140, 1
      %s142 = scalar_select %p139, %s140, %s141
      %p145 = pneg %p139
      %p146 = scmp.eq.s32.totalorder %s18, 1
      %p147 = por %p145, %p146
      %p148 = scmp.ne.s32.totalorder %s140, %s143
      %p149 = scmp.eq.s32.totalorder %s18, 0
      %p150 = por %p148, %p149
      %p151 = scmp.ne.s32.totalorder %s140, %s143
      %p152 = scmp.eq.s32.totalorder %s23, 1
      %p153 = por %p151, %p152
      %p154 = scmp.ne.s32.totalorder %s143, %s144
      %p155 = scmp.eq.s32.totalorder %s23, 0
      %p156 = por %p154, %p155
      %p157 = scmp.ne.s32.totalorder %s143, %s144
      %p158 = scmp.eq.s32.totalorder %s24, 1
      %p159 = por %p157, %p158
      %p161 = scmp.ne.s32.totalorder %s144, %s160
      %p162 = scmp.eq.s32.totalorder %s24, 0
      %p163 = por %p161, %p162
      %s164 = ssub.s32 %s25, %s37
      %s165 = ssub.s32 %s26, %s33
      %s166 = sor.u32 %s164, %s165
      %p167 = scmp.eq.s32.totalorder %s166, 0
      %s169 = sadd.s32 %s168, 1
      %s170 = scalar_select %p167, %s168, %s169
      %p173 = pneg %p167
      %p174 = scmp.eq.s32.totalorder %s18, 1
      %p175 = por %p173, %p174
      %p176 = scmp.ne.s32.totalorder %s168, %s171
      %p177 = scmp.eq.s32.totalorder %s18, 0
      %p178 = por %p176, %p177
      %p179 = scmp.ne.s32.totalorder %s168, %s171
      %p180 = scmp.eq.s32.totalorder %s23, 1
      %p181 = por %p179, %p180
      %p182 = scmp.ne.s32.totalorder %s171, %s172
      %p183 = scmp.eq.s32.totalorder %s23, 0
      %p184 = por %p182, %p183
      %p185 = scmp.ne.s32.totalorder %s171, %s172
      %p186 = scmp.eq.s32.totalorder %s24, 1
      %p187 = por %p185, %p186
      %p189 = scmp.ne.s32.totalorder %s172, %s188
      %p190 = scmp.eq.s32.totalorder %s24, 0
      %p191 = por %p189, %p190
      %p192 = scmp.le.s32.totalorder 1, %s18
      %p193 = scmp.lt.s32.totalorder %s18, 3
      %p194 = pnand %p192, %p193
      %p195 = pneg %p194
      // Predicated region
      $region9: #{tpu_custom_call.1} parent=5 // pred_check
        _
      $region10: #{tpu_custom_call.1} parent=5 // pred_check_branch
        %197 = sbr.rel (%p194) target = $region12
      $region11: #{tpu_custom_call.1} parent=5 // pred_region
        %s198 = ssub.s32 %s18, 1
        // Predicated region
        $region13: #{tpu_custom_call.1} parent=11 // pred_check
          %p199 = pneg %p79
        $region14: #{tpu_custom_call.1} parent=11 // pred_check_branch
          %201 = sbr.rel (%p199) target = $region16
        $region15: #{tpu_custom_call.1} parent=11 // pred_region
          _
        $region16: #{tpu_custom_call.1} parent=11 // pred_fallthru
          _
        // Predicated region
        $region17: #{tpu_custom_call.1} parent=11 // pred_check
          %p202 = pneg %p100
        $region18: #{tpu_custom_call.1} parent=11 // pred_check_branch
          %204 = sbr.rel (%p202) target = $region20
        $region19: #{tpu_custom_call.1} parent=11 // pred_region
          _
        $region20: #{tpu_custom_call.1} parent=11 // pred_fallthru
          _
      $region12: #{tpu_custom_call.1} parent=5 // pred_fallthru
        _
      %p205 = scmp.lt.s32.totalorder %s18, 2
      // Predicated region
      $region21: #{tpu_custom_call.1} parent=5 // pred_check
        %p206 = pneg %p205
      $region22: #{tpu_custom_call.1} parent=5 // pred_check_branch
        %208 = sbr.rel (%p206) target = $region24
      $region23: #{tpu_custom_call.1} parent=5 // pred_region
        // Predicated region
        $region25: #{tpu_custom_call.1} parent=23 // pred_check
          %p209 = pneg %p52
        $region26: #{tpu_custom_call.1} parent=23 // pred_check_branch
          %211 = sbr.rel (%p209) target = $region28
        $region27: #{tpu_custom_call.1} parent=23 // pred_region
          %s212 = smul.u32 2, %s26
          %p213 = scmp.lt.s32.totalorder %s25, 1
          %s214 = scalar_select %p213, %s25, 1
          %p215 = scmp.lt.s32.totalorder %s212, 1
          %s216 = scalar_select %p215, %s212, 1
          %s217 = smul.addr %s214, 4
          %s218 = sadd.s32 %s216, %s217
          %s219 = smul.addr %s218, 4
          %s220 = scalar_lea.vmem %s0, %s219
          %s221 = smul.u32 2, %s26
        $region28: #{tpu_custom_call.1} parent=23 // pred_fallthru
          _
      $region24: #{tpu_custom_call.1} parent=5 // pred_fallthru
        _
      %p222 = scmp.le.s32.totalorder 1, %s18
      %p223 = scmp.lt.s32.totalorder %s18, 3
      %p224 = pnand %p222, %p223
      %p225 = pneg %p224
      // Predicated region
      $region29: #{tpu_custom_call.1} parent=5 // pred_check
        _
      $region30: #{tpu_custom_call.1} parent=5 // pred_check_branch
        %227 = sbr.rel (%p224) target = $region32
      $region31: #{tpu_custom_call.1} parent=5 // pred_region
        %s228 = ssub.s32 %s18, 1
        %s229 = smul.u32 2, %s28
        %p230 = scmp.lt.s32.totalorder %s27, 1
        %s231 = scalar_select %p230, %s27, 1
        %p232 = scmp.lt.s32.totalorder %s229, 1
        %s233 = scalar_select %p232, %s229, 1
        %s234 = smul.addr %s231, 4
        %s235 = sadd.s32 %s233, %s234
        %s236 = smul.addr %s235, 4
        %s237 = scalar_lea.vmem %s0, %s236
        %p238 = pneg %p58
        %p239 = pneg %p55
        %p240 = pneg %p79
        %p241 = pneg %p76
        %p242 = pneg %p100
        %p243 = pneg %p97
        %p244 = pneg %p128
        %p245 = pneg %p125
        %s246 = sand.u32 %s115, 1
        %s247 = scalar_lea.sflag [#allocation3], %s246
        %s248 = sand.u32 %s115, 1
        %s249 = smul.addr %s248, 8
        %s250 = scalar_lea.vmem [#allocation2], %s249
        %p251 = pneg %p156
        %p252 = pneg %p153
        %s253 = sand.u32 %s23, 1
        %s254 = scalar_lea.sflag [#allocation5], %s253
        %s255 = sand.u32 %s143, 1
        %s256 = smul.addr %s255, 8
        %s257 = scalar_lea.vmem [#allocation4], %s256
        %p258 = pneg %p184
        %p259 = pneg %p181
        %s260 = sand.u32 %s23, 1
        %s261 = scalar_lea.sflag [#allocation5], %s260
        %s262 = sand.u32 %s171, 1
        %s263 = smul.addr %s262, 16
        %s264 = scalar_lea.vmem [#allocation6], %s263
        %s265 = smul.u32 2, %s28
        %p266 = scmp.lt.s32.totalorder %s27, 1
        %s267 = scalar_select %p266, %s27, 1
        %p268 = scmp.lt.s32.totalorder %s265, 1
        %s269 = scalar_select %p268, %s265, 1
        %s270 = smul.addr %s267, 4
        %s271 = sadd.s32 %s269, %s270
        %s272 = smul.addr %s271, 4
        %s273 = scalar_lea.vmem %s0, %s272
        %s274 = smul.u32 2, %s28
        %s275 = smul.u32 2, %s28
        %s276 = smul.u32 2, %s28
        %s277 = smul.u32 2, %s28
        %v279 = vld [vmem:[%s1] sm:$0xf]
        %v280 = vld [vmem:[%s1 + $0x4] sm:$0xf]
        %v281 = vld [vmem:[%s1 + $0x8] sm:$0xf]
        %v282 = vld [vmem:[%s1 + $0xc] sm:$0xf]
        %v283 = vld [vmem:[%s273] sm:$0xff]
        %v284 = vld [vmem:[%s273 + $0x8] sm:$0xff]
        %v285 = vld [vmem:[%s2] sm:$0xff]
        %v286 = vld [vmem:[%s2 + $0x8] sm:$0xff]
        %v287 = vld [vmem:[%s2 + $0x10] sm:$0xff]
        %v288 = vld [vmem:[%s2 + $0x18] sm:$0xff]
        %290 = vset.pattern.permute.xlu0 0
        %291 = vperm.xlu0 %290, %v285
        %v292 = vpop.permute.xlu0 %291
        %295 = vset.pattern.permute.xlu0 0
        %296 = vperm.xlu0 %295, %v286
        %v297 = vpop.permute.xlu0 %296
        %300 = vset.pattern.permute.xlu0 0
        %301 = vperm.xlu0 %300, %v287
        %v302 = vpop.permute.xlu0 %301
        %305 = vset.pattern.permute.xlu0 0
        %306 = vperm.xlu0 %305, %v288
        %v307 = vpop.permute.xlu0 %306
        %v313 = vunpack.c.l.b16 %v279
        %v314 = vunpack.c.l.b16 %v280
        %v315 = vunpack.c.l.b16 %v281
        %v316 = vunpack.c.l.b16 %v282
        %v317 = vpack.c.b16 %v314, %v313
        %v318 = vpack.c.b16 %v316, %v315
        %v321 = vunpack.c.l.b16 %v283
        %v322 = vunpack.c.h.b16 %v283
        %v323 = vunpack.c.l.b16 %v284
        %v324 = vunpack.c.h.b16 %v284
        %v325 = vpack.c.b16 %v323, %v321
        %v326 = vpack.c.b16 %v324, %v322
        %vm329 = vcmask 130048
        %v331 = vsel %vm329, %v317, 0
        %v334 = vsel %vm329, %v318, 0
        %336 = vmatprep.subr.bf16.mxu0 %v326
        %337 = vmatpush1.bf16.msra.mxu0 %v325
        %338 = vmatprep.subr.bf16.mxu0 0
        %339 = vmatpush1.bf16.msra.mxu0 0
        %340 = vmatprep.subr.bf16.mxu0 0
        %341 = vmatpush1.bf16.msra.mxu0 0
        %342 = vmatprep.subr.bf16.mxu0 0
        %343 = vmatpush1.bf16.msra.mxu0 0
        %344 = vmatprep.subr.bf16.mxu0 0
        %345 = vmatpush1.bf16.msra.mxu0 0
        %346 = vmatprep.subr.bf16.mxu0 0
        %347 = vmatpush1.bf16.msra.mxu0 0
        %348 = vmatprep.subr.bf16.mxu0 0
        %349 = vmatpush1.bf16.msra.mxu0 0
        %350 = vmatprep.subr.bf16.mxu0 0
        %351 = vmatpush1.bf16.msra.mxu0 0
        %352 = vmatprep.subr.bf16.mxu0 0
        %353 = vmatpush1.bf16.msra.mxu0 0
        %354 = vmatprep.subr.bf16.mxu0 0
        %355 = vmatpush1.bf16.msra.mxu0 0
        %356 = vmatprep.subr.bf16.mxu0 0
        %357 = vmatpush1.bf16.msra.mxu0 0
        %358 = vmatprep.subr.bf16.mxu0 0
        %359 = vmatpush1.bf16.msra.mxu0 0
        %360 = vmatprep.subr.bf16.mxu0 0
        %361 = vmatpush1.bf16.msra.mxu0 0
        %362 = vmatprep.subr.bf16.mxu0 0
        %363 = vmatpush1.bf16.msra.mxu0 0
        %364 = vmatprep.subr.bf16.mxu0 0
        %365 = vmatpush1.bf16.msra.mxu0 0
        %366 = vmatprep.subr.bf16.mxu0 0
        %367 = vmatpush1.bf16.msra.mxu0 0
        %368 = vmatprep.mubr.bf16.mxu0 0
        %369 = vmatmul.mubr.bf16.gmra.mrb[0].mxu0 %v331
        %v370 = vpop.f32.mrb[0].mxu0
        %v371 = vadd.f32 %v292, %v370
        %v372 = vpop.f32.mrb[0].mxu0
        %v373 = vadd.f32 %v292, %v372
        %v374 = vpop.f32.mrb[0].mxu0
        %v375 = vadd.f32 %v297, %v374
        %v376 = vpop.f32.mrb[0].mxu0
        %v377 = vadd.f32 %v297, %v376
        %378 = vmatprep.mubr.bf16.mxu0 0
        %379 = vmatmul.mubr.bf16.gmra.mrb[0].mxu0 %v334
        %v380 = vpop.f32.mrb[0].mxu0
        %v381 = vadd.f32 %v302, %v380
        %v382 = vpop.f32.mrb[0].mxu0
        %v383 = vadd.f32 %v302, %v382
        %v384 = vpop.f32.mrb[0].mxu0
        %v385 = vadd.f32 %v307, %v384
        %v386 = vpop.f32.mrb[0].mxu0
        %v387 = vadd.f32 %v307, %v386
        %388 = vdwg.mxu0
        %s389 = smul.u32 %s28, 256
        %v390 = vlaneseq
        %v391 = vand.u32 %v390, 127
        %v392 = vadd.s32 %v391, 128
        %v393 = vstv %s389
        %v394 = vadd.s32 %v393, %v391
        %v395 = vadd.s32 %v393, %v392
        %vm396 = vcmp.lt.s32.totalorder %v394, 192
        %vm397 = vcmp.lt.s32.totalorder %v395, 192
        %v398 = vsel %vm396, 0.0, -1e+30
        %v399 = vsel %vm397, 0.0, -1e+30
        %v400 = vlaneseq
        %v401 = vshrl.u32 %v400, 7
        %vm402 = vcmp.eq.s32.totalorder %v401, 2
        %v403 = vsel %vm402, 1, 0
        %vm404 = vcmp.eq.s32.totalorder %v403, 1
        %v405 = vsel %vm404, %v398, %v375
        %v406 = vsel %vm404, %v399, %v377
        %v407 = vpack.c.bf16 %v371, %v371
        %v408 = vpack.c.bf16 %v373, %v373
        %v411 = vunpack.c.l.b16 %v407
        %v412 = vunpack.c.l.b16 %v408
        %v413 = vpack.c.b16 %v412, %v411
        %415 = vst [vmem:[%s250] sm:$0xff] %v413
        %v416 = vpack.c.bf16 %v405, %v405
        %v417 = vpack.c.bf16 %v406, %v406
        %v420 = vunpack.c.l.b16 %v416
        %v421 = vunpack.c.l.b16 %v417
        %v422 = vpack.c.b16 %v421, %v420
        %424 = vst [vmem:[%s257] sm:$0xff] %v422
        %v425 = vpack.c.bf16 %v385, %v381
        %v426 = vpack.c.bf16 %v387, %v383
        %v429 = vunpack.c.l.b16 %v425
        %v430 = vunpack.c.l.b16 %v426
        %v431 = vunpack.c.h.b16 %v425
        %v432 = vunpack.c.h.b16 %v426
        %v433 = vpack.c.b16 %v430, %v429
        %v434 = vpack.c.b16 %v432, %v431
        %437 = vst [vmem:[%s264] sm:$0xff] %v433
        %438 = vst [vmem:[%s264 + $0x8] sm:$0xff] %v434
        %s439 = sand.u32 %s115, 1
        %s440 = scalar_lea.sflag [#allocation3], %s439
        %s441 = sand.u32 %s115, 1
        %s442 = smul.addr %s441, 8
        %s443 = scalar_lea.vmem [#allocation2], %s442
        %s444 = sand.u32 %s23, 1
        %s445 = scalar_lea.sflag [#allocation5], %s444
        %s446 = sand.u32 %s143, 1
        %s447 = smul.addr %s446, 8
        %s448 = scalar_lea.vmem [#allocation4], %s447
        %s449 = sand.u32 %s23, 1
        %s450 = scalar_lea.sflag [#allocation5], %s449
        %s451 = sand.u32 %s171, 1
        %s452 = smul.addr %s451, 16
        %s453 = scalar_lea.vmem [#allocation6], %s452
        // Predicated region
        $region33: #{tpu_custom_call.1} parent=31 // pred_check
          %p454 = pneg %p125
        $region34: #{tpu_custom_call.1} parent=31 // pred_check_branch
          %456 = sbr.rel (%p454) target = $region36
        $region35: #{tpu_custom_call.1} parent=31 // pred_region
          %s457 = smul.u32 2, %s28
          %s459 = ssub.s32 128, 128
          %460 = vsyncadd %s440, %s459
          %s461 = smul.addr %s27, 2
          %s462 = sadd.s32 %s457, %s461
          %s463 = smul.addr %s462, 64
          %s464 = scalar_lea.hbm %s3, %s463
          %s466 = sshll.u32 %s443, 4
          %s467 = int_to_ptr.vmem [resolvable:$true] %s466
          %469 = dma.vmem_to_hbm [thread:$0]  %s467, 128, %s464, %s440
        $region36: #{tpu_custom_call.1} parent=31 // pred_fallthru
          _
        // Predicated region
        $region37: #{tpu_custom_call.1} parent=31 // pred_check
          %p470 = pneg %p153
        $region38: #{tpu_custom_call.1} parent=31 // pred_check_branch
          %472 = sbr.rel (%p470) target = $region40
        $region39: #{tpu_custom_call.1} parent=31 // pred_region
          %s473 = smul.u32 2, %s28
          %s475 = ssub.s32 128, 128
          %476 = vsyncadd %s445, %s475
          %s477 = smul.addr %s27, 2
          %s478 = sadd.s32 %s473, %s477
          %s479 = smul.addr %s478, 64
          %s480 = scalar_lea.hbm %s4, %s479
          %s482 = sshll.u32 %s448, 4
          %s483 = int_to_ptr.vmem [resolvable:$true] %s482
          %485 = dma.vmem_to_hbm [thread:$0]  %s483, 128, %s480, %s445
        $region40: #{tpu_custom_call.1} parent=31 // pred_fallthru
          _
        // Predicated region
        $region41: #{tpu_custom_call.1} parent=31 // pred_check
          %p486 = pneg %p181
        $region42: #{tpu_custom_call.1} parent=31 // pred_check_branch
          %488 = sbr.rel (%p486) target = $region44
        $region43: #{tpu_custom_call.1} parent=31 // pred_region
          %s489 = smul.u32 2, %s28
          %s491 = ssub.s32 256, 256
          %492 = vsyncadd %s450, %s491
          %s493 = smul.addr %s27, 4
          %s494 = sadd.s32 %s489, %s493
          %s495 = smul.addr %s494, 64
          %s496 = scalar_lea.hbm %s5, %s495
          %s497 = sshll.u32 %s453, 4
          %s498 = int_to_ptr.vmem [resolvable:$true] %s497
          %503 = dma.vmem_to_hbm [thread:$0]  %s498, 256, %s496, %s450, 128, 128, 8
        $region44: #{tpu_custom_call.1} parent=31 // pred_fallthru
          _
      $region32: #{tpu_custom_call.1} parent=5 // pred_fallthru
        _
      %p504 = scmp.le.s32.totalorder 2, %s18
      // Predicated region
      $region45: #{tpu_custom_call.1} parent=5 // pred_check
        %p505 = pneg %p504
      $region46: #{tpu_custom_call.1} parent=5 // pred_check_branch
        %507 = sbr.rel (%p505) target = $region48
      $region47: #{tpu_custom_call.1} parent=5 // pred_region
        %s508 = ssub.s32 %s18, 2
        // Predicated region
        $region49: #{tpu_custom_call.1} parent=47 // pred_check
          %p509 = pneg %p131
        $region50: #{tpu_custom_call.1} parent=47 // pred_check_branch
          %511 = sbr.rel (%p509) target = $region52
        $region51: #{tpu_custom_call.1} parent=47 // pred_region
          %s512 = sand.u32 %s116, 1
          %s513 = scalar_lea.sflag [#allocation3], %s512
          %s514 = sand.u32 %s116, 1
          %s515 = smul.addr %s514, 8
          %s516 = scalar_lea.vmem [#allocation2], %s515
          %517 = dma.done %s513, 128
        $region52: #{tpu_custom_call.1} parent=47 // pred_fallthru
          _
        // Predicated region
        $region53: #{tpu_custom_call.1} parent=47 // pred_check
          %p518 = pneg %p159
        $region54: #{tpu_custom_call.1} parent=47 // pred_check_branch
          %520 = sbr.rel (%p518) target = $region56
        $region55: #{tpu_custom_call.1} parent=47 // pred_region
          %s521 = sand.u32 %s24, 1
          %s522 = scalar_lea.sflag [#allocation5], %s521
          %s523 = sand.u32 %s144, 1
          %s524 = smul.addr %s523, 8
          %s525 = scalar_lea.vmem [#allocation4], %s524
          %526 = dma.done %s522, 128
        $region56: #{tpu_custom_call.1} parent=47 // pred_fallthru
          _
        // Predicated region
        $region57: #{tpu_custom_call.1} parent=47 // pred_check
          %p527 = pneg %p187
        $region58: #{tpu_custom_call.1} parent=47 // pred_check_branch
          %529 = sbr.rel (%p527) target = $region60
        $region59: #{tpu_custom_call.1} parent=47 // pred_region
          %s530 = sand.u32 %s24, 1
          %s531 = scalar_lea.sflag [#allocation5], %s530
          %s532 = sand.u32 %s172, 1
          %s533 = smul.addr %s532, 16
          %s534 = scalar_lea.vmem [#allocation6], %s533
          %535 = dma.done %s531, 256
        $region60: #{tpu_custom_call.1} parent=47 // pred_fallthru
          _
      $region48: #{tpu_custom_call.1} parent=5 // pred_fallthru
        _
    $region6: #{tpu_custom_call.1} parent=1 // loop_footer
      %s22 = sadd.s32 1, %s18
    $region7: #{tpu_custom_call.1} parent=1 // loop_footer_branch
      %17 = sbr.rel target = $region3
    $region8: #{tpu_custom_call.1} parent=1 // loop_exit
      _
    %536 = vsyncpa [#allocation3], 1
    %s537 = scalar_lea.sflag [#allocation3], 1
    %538 = vsyncpa %s537, 1
    %539 = vsyncpa [#allocation5], 1
    %s540 = scalar_lea.sflag [#allocation5], 1
    %541 = vsyncpa %s540, 1

</llo_original>
